<compile_context>
chip_gen: v5e
topology: v5e:2x2
jax: 0.10.0
libtpu: 0.0.40
codegen_flags: <defaults>
</compile_context>

<pallas_src>
import jax
import jax.numpy as jnp
from jax.experimental import pallas as pl
from jax.experimental.pallas import tpu as pltpu

LANES = 128
SUBLANES = 8
TILE_ROWS_MAX = 2048   # up to 1 MiB per f32 input block
NUM_SHARDS_MAX = 2     # v7x has 2 TensorCores; extra shard is a cheap no-op elsewhere


def _sublane_granularity(*dtypes):
    # Block row granularity that respects sublane packing (f32: 8, bf16: 16, int8: 32).
    g = SUBLANES
    for d in dtypes:
        itemsize = jnp.dtype(d).itemsize
        g = max(g, SUBLANES * max(1, 4 // itemsize))
    return g


def _make_mse_kernel(rows, tile_rows, tiles_per_shard, needs_mask):
    def kernel(p_ref, t_ref, out_ref, acc_ref):
        # acc_ref: (tile_rows, LANES) f32 VMEM scratch, resident across the
        # "arbitrary" (reduction) grid axis.
        @pl.when(pl.program_id(1) == 0)
        def _init():
            acc_ref[...] = jnp.zeros_like(acc_ref)

        d = p_ref[...].astype(jnp.float32) - t_ref[...].astype(jnp.float32)
        sq = d * d

        if needs_mask:
            # Zero out rows beyond the true row count (ragged / padded last block).
            logical_tile = pl.program_id(0) * tiles_per_shard + pl.program_id(1)
            row_in_tile = jax.lax.broadcasted_iota(jnp.int32, sq.shape, 0)
            global_row = logical_tile * tile_rows + row_in_tile
            sq = jnp.where(global_row < rows, sq, 0.0)

        # Pure VPU accumulate — no per-step cross-lane reduce, no SMEM RMW chain.
        acc_ref[...] += sq

        @pl.when(pl.program_id(1) == pl.num_programs(1) - 1)
        def _finalize():
            out_ref[0, 0] = jnp.sum(acc_ref[...])

    return kernel


def mse_loss(pred: jax.Array, target: jax.Array) -> jax.Array:
    """Equivalent to torch.nn.MSELoss() (reduction='mean'). Returns a scalar f32."""
    assert pred.shape == target.shape, "MSELoss requires matching shapes"
    n_elems = pred.size
    if n_elems == 0:
        return jnp.float32(jnp.nan)  # matches torch mean-of-empty behavior

    p = pred.reshape(-1)
    t = target.reshape(-1)

    # Only pad when numel is not lane-aligned (rare).  Padded entries are zero in BOTH
    # arrays, so they contribute exactly 0 to the sum of squared differences.
    rem = n_elems % LANES
    if rem:
        pad = LANES - rem
        p = jnp.pad(p, (0, pad))
        t = jnp.pad(t, (0, pad))

    rows = p.size // LANES
    p2 = p.reshape(rows, LANES)
    t2 = t.reshape(rows, LANES)

    # Row tile: as large as possible, multiple of the sublane granularity
    # (or the full row count for tiny inputs).
    g = _sublane_granularity(pred.dtype, target.dtype)
    if rows >= g:
        tile_rows = min(TILE_ROWS_MAX, (rows // g) * g)
    else:
        tile_rows = rows
    n_tiles = pl.cdiv(rows, tile_rows)

    num_shards = min(NUM_SHARDS_MAX, n_tiles)
    tiles_per_shard = pl.cdiv(n_tiles, num_shards)
    clamp_needed = num_shards * tiles_per_shard > n_tiles
    needs_mask = num_shards * tiles_per_shard * tile_rows != rows

    def in_map(c, i):
        tidx = c * tiles_per_shard + i
        if clamp_needed:
            # Padded grid point: re-read a valid tile; its contribution is masked to 0.
            tidx = jnp.minimum(tidx, n_tiles - 1)
        return (tidx, 0)

    kernel = _make_mse_kernel(rows, tile_rows, tiles_per_shard, needs_mask)

    partials = pl.pallas_call(
        kernel,
        out_shape=jax.ShapeDtypeStruct((num_shards, 1), jnp.float32),
        grid_spec=pltpu.PrefetchScalarGridSpec(
            num_scalar_prefetch=0,
            grid=(num_shards, tiles_per_shard),
            in_specs=[
                pl.BlockSpec((tile_rows, LANES), in_map),
                pl.BlockSpec((tile_rows, LANES), in_map),
            ],
            out_specs=pl.BlockSpec(
                (1, 1), lambda c, i: (c, 0), memory_space=pltpu.SMEM
            ),
            scratch_shapes=[pltpu.VMEM((tile_rows, LANES), jnp.float32)],
        ),
        compiler_params=pltpu.CompilerParams(
            dimension_semantics=("parallel", "arbitrary"),
        ),
    )(p2, t2)

    return (jnp.sum(partials) / jnp.float32(n_elems)).astype(jnp.float32)


if __name__ == "__main__":
    key = jax.random.PRNGKey(0)
    k1, k2, k3, k4, k5, k6 = jax.random.split(key, 6)

    # Primary: small NCHW prediction/target pair (single tile, single shard).
    pred = jax.random.normal(k1, (2, 4, 16, 16), dtype=jnp.float32)
    target = jax.random.normal(k2, (2, 4, 16, 16), dtype=jnp.float32)
    out = jax.block_until_ready(mse_loss(pred, target))
    ref = jnp.mean((pred - target) ** 2)
    assert jnp.allclose(out, ref, rtol=1e-6, atol=1e-6), (out, ref)

    # Multi-tile / two-shard path.
    pred2 = jax.random.normal(k3, (4, 8, 128, 128), dtype=jnp.float32)
    target2 = jax.random.normal(k4, (4, 8, 128, 128), dtype=jnp.float32)
    out2 = jax.block_until_ready(mse_loss(pred2, target2))
    ref2 = jnp.mean((pred2 - target2) ** 2)
    assert jnp.allclose(out2, ref2, rtol=1e-5, atol=1e-6), (out2, ref2)

    # Ragged / lane-padded / bf16 path (masked last block).
    pred3 = jax.random.normal(k5, (2, 3, 30, 30), dtype=jnp.bfloat16)
    target3 = jax.random.normal(k6, (2, 3, 30, 30), dtype=jnp.bfloat16)
    out3 = jax.block_until_ready(mse_loss(pred3, target3))
    ref3 = jnp.mean((pred3.astype(jnp.float32) - target3.astype(jnp.float32)) ** 2)
    assert jnp.allclose(out3, ref3, rtol=1e-4, atol=1e-5), (out3, ref3)

    print("KERNEL_OK")
</pallas_src>

<mosaic_0001>
module attributes {stable_mosaic.version = 11 : i64} {
  func.func @kernel(%arg0: i32, %arg1: i32, %arg2: memref<16x128xf32, #tpu.memory_space<vmem>>, %arg3: memref<16x128xf32, #tpu.memory_space<vmem>>, %arg4: memref<1x1xf32, #tpu.memory_space<smem>>, %arg5: memref<16x128xf32, #tpu.memory_space<vmem>>) attributes {dimension_semantics = [#tpu.dimension_semantics<parallel>, #tpu.dimension_semantics<arbitrary>], iteration_bounds = array<i64: 1, 1>, scalar_prefetch = 0 : i64, scratch_operands = 1 : i64, tpu.core_type = #tpu.core_type<tc>, window_params = [{transform_indices = @transform_0, window_bounds = array<i64: 16, 128>}, {transform_indices = @transform_1, window_bounds = array<i64: 16, 128>}, {transform_indices = @transform_2, window_bounds = array<i64: 1, 1>}]} {
    %c0_i32 = arith.constant 0 : i32
    %0 = arith.cmpi eq, %arg1, %c0_i32 : i32
    %1 = arith.extui %0 : i1 to i32
    %c0_i32_0 = arith.constant 0 : i32
    %2 = arith.cmpi ne, %1, %c0_i32_0 : i32
    scf.if %2 {
      %cst = arith.constant 0.000000e+00 : f32
      %13 = vector.broadcast %cst : f32 to vector<16x128xf32>
      %c0_10 = arith.constant 0 : index
      %c0_11 = arith.constant 0 : index
      %14 = vector.load %arg5[%c0_10, %c0_11] : memref<16x128xf32, #tpu.memory_space<vmem>>, vector<16x128xf32>
      tpu.vector_store %arg5[%c0_10, %c0_11], %13 {strides = array<i32>} : memref<16x128xf32, #tpu.memory_space<vmem>>, vector<16x128xf32>,
    } else {
    }
    %c0 = arith.constant 0 : index
    %c0_1 = arith.constant 0 : index
    %3 = vector.load %arg2[%c0, %c0_1] : memref<16x128xf32, #tpu.memory_space<vmem>>, vector<16x128xf32>
    %c0_2 = arith.constant 0 : index
    %c0_3 = arith.constant 0 : index
    %4 = vector.load %arg3[%c0_2, %c0_3] : memref<16x128xf32, #tpu.memory_space<vmem>>, vector<16x128xf32>
    %5 = arith.subf %3, %4 : vector<16x128xf32>
    %6 = arith.mulf %5, %5 : vector<16x128xf32>
    %c0_4 = arith.constant 0 : index
    %c0_5 = arith.constant 0 : index
    %7 = vector.load %arg5[%c0_4, %c0_5] : memref<16x128xf32, #tpu.memory_space<vmem>>, vector<16x128xf32>
    %8 = arith.addf %7, %6 : vector<16x128xf32>
    %c0_6 = arith.constant 0 : index
    %c0_7 = arith.constant 0 : index
    %9 = vector.load %arg5[%c0_6, %c0_7] : memref<16x128xf32, #tpu.memory_space<vmem>>, vector<16x128xf32>
    tpu.vector_store %arg5[%c0_6, %c0_7], %8 {strides = array<i32>} : memref<16x128xf32, #tpu.memory_space<vmem>>, vector<16x128xf32>,
    %c0_i32_8 = arith.constant 0 : i32
    %10 = arith.cmpi eq, %arg1, %c0_i32_8 : i32
    %11 = arith.extui %10 : i1 to i32
    %c0_i32_9 = arith.constant 0 : i32
    %12 = arith.cmpi ne, %11, %c0_i32_9 : i32
    scf.if %12 {
      %c0_10 = arith.constant 0 : index
      %c0_11 = arith.constant 0 : index
      %13 = vector.load %arg5[%c0_10, %c0_11] : memref<16x128xf32, #tpu.memory_space<vmem>>, vector<16x128xf32>
      %14 = vector.shape_cast %13 : vector<16x128xf32> to vector<1x16x128xf32>
      %cst = arith.constant dense<0.000000e+00> : vector<1xf32>
      %15 = vector.multi_reduction <add>, %14, %cst [1, 2] : vector<1x16x128xf32> to vector<1xf32>
      %16 = vector.shape_cast %15 : vector<1xf32> to vector<1x1x1xf32>
      %17 = vector.extract %16[0, 0, 0] : f32 from vector<1x1x1xf32>
      %c0_12 = arith.constant 0 : index
      %c0_13 = arith.constant 0 : index
      %18 = memref.load %arg4[%c0_12, %c0_13] : memref<1x1xf32, #tpu.memory_space<smem>>
      memref.store %17, %arg4[%c0_12, %c0_13] : memref<1x1xf32, #tpu.memory_space<smem>>
    } else {
    }
    return
  }
  func.func @transform_0(%arg0: i32, %arg1: i32) -> (i32, i32) {
    %c1_i32 = arith.constant 1 : i32
    %0 = arith.muli %arg0, %c1_i32 : i32
    %1 = arith.addi %0, %arg1 : i32
    %c0_i32 = arith.constant 0 : i32
    %c0_i32_0 = arith.constant 0 : i32
    return %1, %c0_i32 : i32, i32
  }
  func.func @transform_1(%arg0: i32, %arg1: i32) -> (i32, i32) {
    %c1_i32 = arith.constant 1 : i32
    %0 = arith.muli %arg0, %c1_i32 : i32
    %1 = arith.addi %0, %arg1 : i32
    %c0_i32 = arith.constant 0 : i32
    %c0_i32_0 = arith.constant 0 : i32
    return %1, %c0_i32 : i32, i32
  }
  func.func @transform_2(%arg0: i32, %arg1: i32) -> (i32, i32) {
    %c0_i32 = arith.constant 0 : i32
    %c0_i32_0 = arith.constant 0 : i32
    return %arg0, %c0_i32 : i32, i32
  }
}

</mosaic_0001>

<llo_original>
// kernel: tpu_custom_call.1
$region0: #{tpu_custom_call.1}
  #allocation0 [shape = 'u32[]', space=smem, size = 0x4, offset = 0x4, fixed_abs, tag = 'smem constant byte address 0x4 - core index']
  #allocation1 [shape = 'u32[72,128]{1,0:T(1,128)}', space=vmem, size = 0x9000, scoped, tag = 'internal scratch']
  #allocation2 [shape = 'f32[16,128]{1,0:T(8,128)}', space=vmem, size = 0x2000, scoped, tag = 'scratch operand']
  %s0 = inlined_call_operand.hbm [shape: f32[16,128], index: 0, kind: input, shape index: {}]
  %s1 = inlined_call_operand.hbm [shape: f32[16,128], index: 1, kind: input, shape index: {}]
  %s2 = inlined_call_operand.hbm [shape: f32[1,1], index: 2, kind: output, shape index: {}]
  %s3 = sld [smem:[#allocation0]]
  $region34: #{tpu_custom_call.1} parent=0
    _
  %s5 = ssub.s32 1, %s3
  %s6 = scalar_select 0, %s5, %s3
  $region1: #{tpu_custom_call.1} parent=0
    #allocation3 [shape = 'u8[8192]{0}', space=vmem, size = 0x2000, scoped, tag = 'input window, operand 0, single buffered']
    #allocation4 [shape = 's32[1]{0}', space=sflag, size = 0x4, scoped, tag = 'scoped memory for tpu_custom_call.1']
    #allocation5 [shape = 's32[1]{0}', space=sflag, size = 0x4, scoped, tag = 'scoped memory for tpu_custom_call.1']
    #allocation6 [shape = 'u8[8192]{0}', space=vmem, size = 0x2000, scoped, tag = 'input window, operand 1, single buffered']
    #allocation7 [shape = 's32[1]{0}', space=sflag, size = 0x4, scoped, tag = 'scoped memory for tpu_custom_call.1']
    #allocation8 [shape = 'u8[512]{0}', space=smem, size = 0x200, scoped, tag = 'output window, operand 0, single buffered']
    %7 = vsyncpa [#allocation4], 0
    %8 = vsyncpa [#allocation7], 0
    %9 = vsyncpa [#allocation5], 0
    // Predicated region
    $region2: #{tpu_custom_call.1} parent=1 // pred_check
      _
    $region3: #{tpu_custom_call.1} parent=1 // pred_check_branch
      %11 = sbr.rel (0) target = $region5
    $region4: #{tpu_custom_call.1} parent=1 // pred_region
      %s12 = sadd.s32 0, 0
      %s13 = smul.u32 2, %s12
      %15 = vsyncadd [#allocation4], 0
      %s16 = smul.addr %s13, 8
      %s17 = scalar_lea.hbm %s0, %s16
      %s18 = sshll.u32 %s17, 4
      %s19 = int_to_ptr.hbm [resolvable:$true] %s18
      %s20 = sshll.u32 [#allocation3], 4
      %s21 = int_to_ptr.vmem [resolvable:$true] %s20
      %26 = dma.hbm_to_vmem [thread:$0]  %s19, 256, %s21, [#allocation4], 128, 128, 8
    $region5: #{tpu_custom_call.1} parent=1 // pred_fallthru
      _
    // Predicated region
    $region6: #{tpu_custom_call.1} parent=1 // pred_check
      _
    $region7: #{tpu_custom_call.1} parent=1 // pred_check_branch
      %28 = sbr.rel (0) target = $region9
    $region8: #{tpu_custom_call.1} parent=1 // pred_region
      %s29 = sadd.s32 0, 0
      %s30 = smul.u32 2, %s29
      %32 = vsyncadd [#allocation7], 0
      %s33 = smul.addr %s30, 8
      %s34 = scalar_lea.hbm %s1, %s33
      %s35 = sshll.u32 %s34, 4
      %s36 = int_to_ptr.hbm [resolvable:$true] %s35
      %s37 = sshll.u32 [#allocation6], 4
      %s38 = int_to_ptr.vmem [resolvable:$true] %s37
      %43 = dma.hbm_to_vmem [thread:$0]  %s36, 256, %s38, [#allocation7], 128, 128, 8
    $region9: #{tpu_custom_call.1} parent=1 // pred_fallthru
      _
    // Predicated region
    $region10: #{tpu_custom_call.1} parent=1 // pred_check
      _
    $region11: #{tpu_custom_call.1} parent=1 // pred_check_branch
      %45 = sbr.rel (0) target = $region13
    $region12: #{tpu_custom_call.1} parent=1 // pred_region
      %47 = dma.done [#allocation4], 256
    $region13: #{tpu_custom_call.1} parent=1 // pred_fallthru
      _
    // Predicated region
    $region14: #{tpu_custom_call.1} parent=1 // pred_check
      _
    $region15: #{tpu_custom_call.1} parent=1 // pred_check_branch
      %49 = sbr.rel (0) target = $region17
    $region16: #{tpu_custom_call.1} parent=1 // pred_region
      %51 = dma.done [#allocation7], 256
    $region17: #{tpu_custom_call.1} parent=1 // pred_fallthru
      _
    %s52 = sadd.s32 0, 0
    %s53 = smul.u32 2, %s52
    %s54 = sadd.s32 0, 0
    %s55 = smul.u32 2, %s54
    %p56 = scmp.eq.s32.totalorder 0, 0
    // Predicated region
    $region18: #{tpu_custom_call.1} parent=1 // pred_check
      %p57 = pneg %p56
    $region19: #{tpu_custom_call.1} parent=1 // pred_check_branch
      %59 = sbr.rel (%p57) target = $region21
    $region20: #{tpu_custom_call.1} parent=1 // pred_region
      %60 = vst [vmem:[#allocation2] sm:$0xff] 0.0
      %61 = vst [vmem:[#allocation2 + $0x8] sm:$0xff] 0.0
    $region21: #{tpu_custom_call.1} parent=1 // pred_fallthru
      _
    %v62 = vld [vmem:[#allocation3] sm:$0xff]
    %v63 = vld [vmem:[#allocation3 + $0x8] sm:$0xff]
    %v64 = vld [vmem:[#allocation6] sm:$0xff]
    %v65 = vld [vmem:[#allocation6 + $0x8] sm:$0xff]
    %v66 = vsub.f32 %v62, %v64
    %v67 = vsub.f32 %v63, %v65
    %v68 = vmul.f32 %v66, %v66
    %v69 = vmul.f32 %v67, %v67
    %v70 = vld [vmem:[#allocation2] sm:$0xff]
    %v71 = vld [vmem:[#allocation2 + $0x8] sm:$0xff]
    %v72 = vadd.f32 %v70, %v68
    %v73 = vadd.f32 %v71, %v69
    %74 = vst [vmem:[#allocation2] sm:$0xff] %v72
    %75 = vst [vmem:[#allocation2 + $0x8] sm:$0xff] %v73
    // Predicated region
    $region22: #{tpu_custom_call.1} parent=1 // pred_check
      %p76 = pneg %p56
    $region23: #{tpu_custom_call.1} parent=1 // pred_check_branch
      %78 = sbr.rel (%p76) target = $region25
    $region24: #{tpu_custom_call.1} parent=1 // pred_region
      %v79 = vld [vmem:[#allocation2] sm:$0xff]
      %v80 = vld [vmem:[#allocation2 + $0x8] sm:$0xff]
      %v81 = vadd.f32 %v79, %v80
      %82 = vadd.xlane.f32.xlu0 %v81
      %v83 = vpop.xlane.xlu0 %82
      %v84 = vrot.slane %v83, 4
      %v85 = vadd.f32 %v83, %v84
      %v86 = vrot.slane %v85, 2
      %v87 = vadd.f32 %v85, %v86
      %v88 = vrot.slane %v87, 1
      %v89 = vadd.f32 %v87, %v88
      %s90 = vtos %v89
      %s91 = scalar_lea.smem [#allocation8], 0
      %92 = sst [smem:[%s91]] %s90
    $region25: #{tpu_custom_call.1} parent=1 // pred_fallthru
      _
    // Predicated region
    $region26: #{tpu_custom_call.1} parent=1 // pred_check
      _
    $region27: #{tpu_custom_call.1} parent=1 // pred_check_branch
      %94 = sbr.rel (0) target = $region29
    $region28: #{tpu_custom_call.1} parent=1 // pred_region
      %96 = vsyncadd [#allocation5], 0
      %s98 = sshll.u32 %s2, 4
      %s99 = int_to_ptr.hbm [resolvable:$true] %s98
      %101 = dma.smem_to_hbm [#allocation8], 16, %s99, [#allocation5]
    $region29: #{tpu_custom_call.1} parent=1 // pred_fallthru
      _
    // Predicated region
    $region30: #{tpu_custom_call.1} parent=1 // pred_check
      _
    $region31: #{tpu_custom_call.1} parent=1 // pred_check_branch
      %103 = sbr.rel (0) target = $region33
    $region32: #{tpu_custom_call.1} parent=1 // pred_region
      %105 = dma.done [#allocation5], 16
    $region33: #{tpu_custom_call.1} parent=1 // pred_fallthru
      _
    %106 = sfence
    %107 = vsyncpa [#allocation4], 1
    %108 = vsyncpa [#allocation7], 1
    %109 = vsyncpa [#allocation5], 1

</llo_original>
